<compile_context>
chip_gen: v6e
topology: v6e:2x2x1
jax: 0.10.0
libtpu: 0.0.40
codegen_flags: <defaults>
</compile_context>

<pallas_src>
import math
import functools

import jax
import jax.numpy as jnp
import numpy as np
from jax.experimental import pallas as pl
from jax.experimental.pallas import tpu as pltpu


def _timestep_embedder_kernel(t_ref, freqs_ref, w1_ref, b1_ref, w2_ref, b2_ref,
                              o_ref, *, compute_dtype):
    # t_ref:     (TN, 1)    f32   (one tile of timesteps)
    # freqs_ref: (1, half)  f32   (resident)
    # w1_ref:    (F, H)     cdt   (resident; F = 2*half)
    # b1_ref:    (1, H)     f32   (resident)
    # w2_ref:    (H, H)     cdt   (resident)
    # b2_ref:    (1, H)     f32   (resident)
    # o_ref:     (TN, H)
    t = t_ref[...]                                   # (TN, 1)
    args = t * freqs_ref[...]                        # (TN, half) VPU broadcast
    cos_e = jnp.cos(args)                            # EUP
    sin_e = jnp.sin(args)                            # EUP

    # [cos | sin] along lanes; with half=128 the split sits on a lane-tile boundary,
    # so the concat is layout-free and the first Linear is a single K=2*half MXU pass.
    emb = jnp.concatenate([cos_e, sin_e], axis=-1).astype(compute_dtype)  # (TN, F)

    h = jnp.dot(emb, w1_ref[...], preferred_element_type=jnp.float32)     # (TN, H) f32
    h = h + b1_ref[...]

    # SiLU in f32 (single EUP logistic per element; no exp-overflow fragility).
    h = h * jax.nn.sigmoid(h)

    out = jnp.dot(h.astype(compute_dtype), w2_ref[...],
                  preferred_element_type=jnp.float32) + b2_ref[...]
    o_ref[...] = out.astype(o_ref.dtype)


def timestep_embedder(t, freqs, w1, b1, w2, b2, *, max_block_n=512,
                      compute_dtype=jnp.bfloat16, out_dtype=jnp.float32):
    """t: (N,) float timesteps; returns (N, H) embedding in `out_dtype`.

    freqs: (half,) sinusoidal frequency table; w1: (F, H) with F = 2*half; w2: (H, H).
    compute_dtype controls the MXU operand dtype (bf16 fast path on v6e/v7x; pass
    jnp.float32 for bit-comparable f32 math). max_block_n caps the per-step row tile:
    small batches collapse to a single grid step, large batches stream in tiles of
    max_block_n rows with resident weights.
    """
    N = t.shape[0]
    F, H = w1.shape
    half = freqs.shape[0]
    assert F == 2 * half, "frequency_embedding_size must be even"
    assert w2.shape == (H, H)
    assert H % 128 == 0, "hidden_size must be lane-dense (multiple of 128)"

    # Row granularity 16: satisfies the (8,128) rule for f32 blocks and keeps bf16
    # operand vregs fully packed after the .astype(compute_dtype) casts.
    row_align = 16
    max_block_n = max(row_align, (max_block_n // row_align) * row_align)
    n_pad = ((N + row_align - 1) // row_align) * row_align
    if n_pad <= max_block_n:
        block_n = n_pad            # single grid step: no per-step overhead, no megacore split
    else:
        block_n = max_block_n
    n_blocks = pl.cdiv(n_pad, block_n)
    n_pad = n_blocks * block_n

    # Cheap padding (no scatter): padded rows compute garbage that is sliced off.
    t2 = jnp.pad(t.astype(jnp.float32), (0, n_pad - N)).reshape(n_pad, 1)

    freqs2 = freqs.astype(jnp.float32).reshape(1, half)
    w1c = w1.astype(compute_dtype)
    w2c = w2.astype(compute_dtype)
    b1_2 = b1.astype(jnp.float32).reshape(1, H)
    b2_2 = b2.astype(jnp.float32).reshape(1, H)

    def resident(shape):
        # Same block every grid step -> stays in VMEM, no re-DMA across N tiles.
        return pl.BlockSpec(shape, lambda i: (0, 0))

    # Only shard across TensorCores when there are multiple full row tiles to split;
    # for a single step "arbitrary" avoids duplicated weight DMA / prologue on v7x.
    semantics = ("parallel",) if n_blocks > 1 else ("arbitrary",)

    out = pl.pallas_call(
        functools.partial(_timestep_embedder_kernel, compute_dtype=compute_dtype),
        out_shape=jax.ShapeDtypeStruct((n_pad, H), out_dtype),
        grid=(n_blocks,),
        in_specs=[
            pl.BlockSpec((block_n, 1), lambda i: (i, 0)),   # t tiles stream through
            resident((1, half)),                            # freqs
            resident((F, H)),                               # W1
            resident((1, H)),                               # b1
            resident((H, H)),                               # W2
            resident((1, H)),                               # b2
        ],
        out_specs=pl.BlockSpec((block_n, H), lambda i: (i, 0)),
        compiler_params=pltpu.CompilerParams(dimension_semantics=semantics),
    )(t2, freqs2, w1c, b1_2, w2c, b2_2)
    return out[:N]


def timestep_embedder_ref(t, freqs, w1, b1, w2, b2):
    """Pure-JAX f32 reference mirroring the PyTorch TimestepEmbedder.forward."""
    args = t.astype(jnp.float32)[:, None] * freqs[None, :]
    emb = jnp.concatenate([jnp.cos(args), jnp.sin(args)], axis=-1)
    h = emb @ w1 + b1
    h = h * jax.nn.sigmoid(h)
    return h @ w2 + b2


if __name__ == "__main__":
    # Module hyperparameters (small but TPU-tile-friendly).
    frequency_embedding_size = 256          # F (module default)
    hidden_size = 128                       # H
    N = 16                                  # batch of timesteps
    max_period = 10000.0
    half = frequency_embedding_size // 2

    key = jax.random.PRNGKey(0)
    k_t, k_w1, k_b1, k_w2, k_b2 = jax.random.split(key, 5)

    # Fractional timesteps, one per batch element.
    t = jax.random.uniform(k_t, (N,), jnp.float32, minval=0.0, maxval=1000.0)

    # Sinusoidal frequency table (== torch.exp(-log(max_period)*arange(half)/half)).
    freqs = jnp.exp(
        -math.log(max_period) * jnp.arange(half, dtype=jnp.float32) / half
    )

    # Deterministic MLP parameters, stored as (in, out) = PyTorch weight.T.
    w1 = 0.02 * jax.random.normal(k_w1, (frequency_embedding_size, hidden_size), jnp.float32)
    b1 = 0.01 * jax.random.normal(k_b1, (hidden_size,), jnp.float32)
    w2 = 0.02 * jax.random.normal(k_w2, (hidden_size, hidden_size), jnp.float32)
    b2 = 0.01 * jax.random.normal(k_b2, (hidden_size,), jnp.float32)

    ref = timestep_embedder_ref(t, freqs, w1, b1, w2, b2)

    # Exact-semantics f32 path, single grid step: tight tolerance.
    out_f32 = timestep_embedder(t, freqs, w1, b1, w2, b2,
                                compute_dtype=jnp.float32)
    out_f32 = jax.block_until_ready(out_f32)
    assert out_f32.shape == (N, hidden_size)
    np.testing.assert_allclose(np.asarray(out_f32), np.asarray(ref),
                               rtol=1e-5, atol=1e-5)

    # bf16 MXU fast path (default): f32 accumulation, looser tolerance.
    out_bf16 = timestep_embedder(t, freqs, w1, b1, w2, b2,
                                 compute_dtype=jnp.bfloat16)
    out_bf16 = jax.block_until_ready(out_bf16)
    assert out_bf16.shape == (N, hidden_size)
    np.testing.assert_allclose(np.asarray(out_bf16), np.asarray(ref),
                               rtol=2e-2, atol=2e-2)

    # Large-N / multi-tile path (exercises the gridded, resident-weight pipeline).
    N_big = 40
    t_big = jax.random.uniform(jax.random.PRNGKey(1), (N_big,), jnp.float32,
                               minval=0.0, maxval=1000.0)
    ref_big = timestep_embedder_ref(t_big, freqs, w1, b1, w2, b2)
    out_big = timestep_embedder(t_big, freqs, w1, b1, w2, b2,
                                max_block_n=16, compute_dtype=jnp.float32)
    out_big = jax.block_until_ready(out_big)
    assert out_big.shape == (N_big, hidden_size)
    np.testing.assert_allclose(np.asarray(out_big), np.asarray(ref_big),
                               rtol=1e-5, atol=1e-5)

    print("KERNEL_OK")
</pallas_src>

<mosaic_0001>
module attributes {stable_mosaic.version = 11 : i64} {
  func.func @_timestep_embedder_kernel(%arg0: i32, %arg1: memref<16x1xf32, #tpu.memory_space<vmem>>, %arg2: memref<1x128xf32, #tpu.memory_space<vmem>>, %arg3: memref<256x128xf32, #tpu.memory_space<vmem>>, %arg4: memref<1x128xf32, #tpu.memory_space<vmem>>, %arg5: memref<128x128xf32, #tpu.memory_space<vmem>>, %arg6: memref<1x128xf32, #tpu.memory_space<vmem>>, %arg7: memref<16x128xf32, #tpu.memory_space<vmem>>) attributes {dimension_semantics = [#tpu.dimension_semantics<arbitrary>], iteration_bounds = array<i64: 1>, scalar_prefetch = 0 : i64, scratch_operands = 0 : i64, tpu.core_type = #tpu.core_type<tc>, window_params = [{transform_indices = @transform_0, window_bounds = array<i64: 16, 1>}, {pipeline_mode = #tpu.pipeline_mode<synchronous>, transform_indices = @transform_1, window_bounds = array<i64: 1, 128>}, {pipeline_mode = #tpu.pipeline_mode<synchronous>, transform_indices = @transform_2, window_bounds = array<i64: 256, 128>}, {pipeline_mode = #tpu.pipeline_mode<synchronous>, transform_indices = @transform_3, window_bounds = array<i64: 1, 128>}, {pipeline_mode = #tpu.pipeline_mode<synchronous>, transform_indices = @transform_4, window_bounds = array<i64: 128, 128>}, {pipeline_mode = #tpu.pipeline_mode<synchronous>, transform_indices = @transform_5, window_bounds = array<i64: 1, 128>}, {transform_indices = @transform_6, window_bounds = array<i64: 16, 128>}]} {
    %c0 = arith.constant 0 : index
    %c0_0 = arith.constant 0 : index
    %0 = vector.load %arg1[%c0, %c0_0] : memref<16x1xf32, #tpu.memory_space<vmem>>, vector<16x1xf32>
    %c0_1 = arith.constant 0 : index
    %c0_2 = arith.constant 0 : index
    %1 = vector.load %arg2[%c0_1, %c0_2] : memref<1x128xf32, #tpu.memory_space<vmem>>, vector<1x128xf32>
    %2 = vector.broadcast %0 : vector<16x1xf32> to vector<16x128xf32>
    %3 = vector.broadcast %1 : vector<1x128xf32> to vector<16x128xf32>
    %4 = arith.mulf %2, %3 : vector<16x128xf32>
    %5 = math.cos %4 : vector<16x128xf32>
    %6 = math.sin %4 : vector<16x128xf32>
    %7 = tpu.concatenate %5, %6 in 1 : vector<16x128xf32>, vector<16x128xf32> -> vector<16x256xf32>
    %c0_3 = arith.constant 0 : index
    %c0_4 = arith.constant 0 : index
    %8 = vector.load %arg3[%c0_3, %c0_4] : memref<256x128xf32, #tpu.memory_space<vmem>>, vector<256x128xf32>
    %cst = arith.constant dense<0.000000e+00> : vector<16x128xf32>
    %9 = tpu.matmul %7, %8, %cst {dimension_numbers = #tpu.dot_dimension_numbers<[1], [0], [0], [1], [0, 0, 1, 1], [], []>} : vector<16x256xf32>, vector<256x128xf32>, vector<16x128xf32> -> vector<16x128xf32>
    %c0_5 = arith.constant 0 : index
    %c0_6 = arith.constant 0 : index
    %10 = vector.load %arg4[%c0_5, %c0_6] : memref<1x128xf32, #tpu.memory_space<vmem>>, vector<1x128xf32>
    %11 = vector.broadcast %10 : vector<1x128xf32> to vector<16x128xf32>
    %12 = arith.addf %9, %11 : vector<16x128xf32>
    %13 = arith.negf %12 : vector<16x128xf32>
    %14 = math.exp %13 : vector<16x128xf32>
    %cst_7 = arith.constant 1.000000e+00 : f32
    %15 = vector.broadcast %cst_7 : f32 to vector<16x128xf32>
    %16 = arith.addf %15, %14 : vector<16x128xf32>
    %17 = arith.divf %15, %16 : vector<16x128xf32>
    %18 = arith.mulf %12, %17 : vector<16x128xf32>
    %c0_8 = arith.constant 0 : index
    %c0_9 = arith.constant 0 : index
    %19 = vector.load %arg5[%c0_8, %c0_9] : memref<128x128xf32, #tpu.memory_space<vmem>>, vector<128x128xf32>
    %cst_10 = arith.constant dense<0.000000e+00> : vector<16x128xf32>
    %20 = tpu.matmul %18, %19, %cst_10 {dimension_numbers = #tpu.dot_dimension_numbers<[1], [0], [0], [1], [0, 0, 1, 1], [], []>} : vector<16x128xf32>, vector<128x128xf32>, vector<16x128xf32> -> vector<16x128xf32>
    %c0_11 = arith.constant 0 : index
    %c0_12 = arith.constant 0 : index
    %21 = vector.load %arg6[%c0_11, %c0_12] : memref<1x128xf32, #tpu.memory_space<vmem>>, vector<1x128xf32>
    %22 = vector.broadcast %21 : vector<1x128xf32> to vector<16x128xf32>
    %23 = arith.addf %20, %22 : vector<16x128xf32>
    %c0_13 = arith.constant 0 : index
    %c0_14 = arith.constant 0 : index
    %24 = vector.load %arg7[%c0_13, %c0_14] : memref<16x128xf32, #tpu.memory_space<vmem>>, vector<16x128xf32>
    tpu.vector_store %arg7[%c0_13, %c0_14], %23 {strides = array<i32>} : memref<16x128xf32, #tpu.memory_space<vmem>>, vector<16x128xf32>,
    return
  }
  func.func @transform_0(%arg0: i32) -> (i32, i32) {
    %c0_i32 = arith.constant 0 : i32
    %c0_i32_0 = arith.constant 0 : i32
    return %arg0, %c0_i32 : i32, i32
  }
  func.func @transform_1(%arg0: i32) -> (i32, i32) {
    %c0_i32 = arith.constant 0 : i32
    %c0_i32_0 = arith.constant 0 : i32
    %c0_i32_1 = arith.constant 0 : i32
    return %c0_i32, %c0_i32_0 : i32, i32
  }
  func.func @transform_2(%arg0: i32) -> (i32, i32) {
    %c0_i32 = arith.constant 0 : i32
    %c0_i32_0 = arith.constant 0 : i32
    %c0_i32_1 = arith.constant 0 : i32
    return %c0_i32, %c0_i32_0 : i32, i32
  }
  func.func @transform_3(%arg0: i32) -> (i32, i32) {
    %c0_i32 = arith.constant 0 : i32
    %c0_i32_0 = arith.constant 0 : i32
    %c0_i32_1 = arith.constant 0 : i32
    return %c0_i32, %c0_i32_0 : i32, i32
  }
  func.func @transform_4(%arg0: i32) -> (i32, i32) {
    %c0_i32 = arith.constant 0 : i32
    %c0_i32_0 = arith.constant 0 : i32
    %c0_i32_1 = arith.constant 0 : i32
    return %c0_i32, %c0_i32_0 : i32, i32
  }
  func.func @transform_5(%arg0: i32) -> (i32, i32) {
    %c0_i32 = arith.constant 0 : i32
    %c0_i32_0 = arith.constant 0 : i32
    %c0_i32_1 = arith.constant 0 : i32
    return %c0_i32, %c0_i32_0 : i32, i32
  }
  func.func @transform_6(%arg0: i32) -> (i32, i32) {
    %c0_i32 = arith.constant 0 : i32
    %c0_i32_0 = arith.constant 0 : i32
    return %arg0, %c0_i32 : i32, i32
  }
}

</mosaic_0001>

<llo_original>
// kernel: tpu_custom_call.1
$region0: #{tpu_custom_call.1}
  #allocation0 [shape = 'u32[]', space=smem, size = 0x4, offset = 0x4, fixed_abs, tag = 'smem constant byte address 0x4 - core index']
  #allocation1 [shape = 'u32[144,128]{1,0:T(1,128)}', space=vmem, size = 0x12000, scoped, tag = 'internal scratch']
  %s0 = inlined_call_operand.vmem [shape: f32[16,1], index: 0, kind: input, shape index: {}]
  %s1 = inlined_call_operand.vmem [shape: f32[1,128], index: 1, kind: input, shape index: {}]
  %s2 = inlined_call_operand.hbm [shape: f32[256,128], index: 2, kind: input, shape index: {}]
  %s3 = inlined_call_operand.vmem [shape: f32[1,128], index: 3, kind: input, shape index: {}]
  %s4 = inlined_call_operand.hbm [shape: f32[128,128], index: 4, kind: input, shape index: {}]
  %s5 = inlined_call_operand.vmem [shape: f32[1,128], index: 5, kind: input, shape index: {}]
  %s6 = inlined_call_operand.hbm [shape: f32[16,128], index: 6, kind: output, shape index: {}]
  %s7 = sld [smem:[#allocation0]]
  $region42: #{tpu_custom_call.1} parent=0
    _
  %s9 = ssub.s32 1, %s7
  %s10 = scalar_select 0, %s9, %s7
  $region1: #{tpu_custom_call.1} parent=0
    #allocation2 [shape = 'u8[131072]{0}', space=vmem, size = 0x20000, scoped, tag = 'input window, operand 2, single buffered']
    #allocation3 [shape = 's32[1]{0}', space=sflag, size = 0x4, scoped, tag = 'scoped memory for tpu_custom_call.1']
    #allocation4 [shape = 's32[1]{0}', space=sflag, size = 0x4, scoped, tag = 'scoped memory for tpu_custom_call.1']
    #allocation5 [shape = 'u8[65536]{0}', space=vmem, size = 0x10000, scoped, tag = 'input window, operand 4, single buffered']
    #allocation6 [shape = 's32[1]{0}', space=sflag, size = 0x4, scoped, tag = 'scoped memory for tpu_custom_call.1']
    #allocation7 [shape = 'u8[8192]{0}', space=vmem, size = 0x2000, scoped, tag = 'output window, operand 0, single buffered']
    %11 = vsyncpa [#allocation3], 0
    %12 = vsyncpa [#allocation6], 0
    %13 = vsyncpa [#allocation4], 0
    // Predicated region
    $region2: #{tpu_custom_call.1} parent=1 // pred_check
      _
    $region3: #{tpu_custom_call.1} parent=1 // pred_check_branch
      %15 = sbr.rel (0) target = $region5
    $region4: #{tpu_custom_call.1} parent=1 // pred_region
      _
    $region5: #{tpu_custom_call.1} parent=1 // pred_fallthru
      _
    // Predicated region
    $region6: #{tpu_custom_call.1} parent=1 // pred_check
      _
    $region7: #{tpu_custom_call.1} parent=1 // pred_check_branch
      %17 = sbr.rel (0) target = $region9
    $region8: #{tpu_custom_call.1} parent=1 // pred_region
      _
    $region9: #{tpu_custom_call.1} parent=1 // pred_fallthru
      _
    // Predicated region
    $region10: #{tpu_custom_call.1} parent=1 // pred_check
      _
    $region11: #{tpu_custom_call.1} parent=1 // pred_check_branch
      %19 = sbr.rel (0) target = $region13
    $region12: #{tpu_custom_call.1} parent=1 // pred_region
      %s21 = ssub.s32 4096, 4096
      %22 = vsyncadd [#allocation3], %s21
      %s23 = sshll.u32 [#allocation2], 4
      %s24 = int_to_ptr.vmem [resolvable:$true] %s23
      %29 = dma.hbm_to_vmem [thread:$0]  %s2, 4096, %s24, [#allocation3], 128, 128, 8
    $region13: #{tpu_custom_call.1} parent=1 // pred_fallthru
      _
    // Predicated region
    $region14: #{tpu_custom_call.1} parent=1 // pred_check
      _
    $region15: #{tpu_custom_call.1} parent=1 // pred_check_branch
      %31 = sbr.rel (0) target = $region17
    $region16: #{tpu_custom_call.1} parent=1 // pred_region
      _
    $region17: #{tpu_custom_call.1} parent=1 // pred_fallthru
      _
    // Predicated region
    $region18: #{tpu_custom_call.1} parent=1 // pred_check
      _
    $region19: #{tpu_custom_call.1} parent=1 // pred_check_branch
      %33 = sbr.rel (0) target = $region21
    $region20: #{tpu_custom_call.1} parent=1 // pred_region
      %s35 = ssub.s32 2048, 2048
      %36 = vsyncadd [#allocation6], %s35
      %s37 = sshll.u32 [#allocation5], 4
      %s38 = int_to_ptr.vmem [resolvable:$true] %s37
      %43 = dma.hbm_to_vmem [thread:$0]  %s4, 2048, %s38, [#allocation6], 128, 128, 8
    $region21: #{tpu_custom_call.1} parent=1 // pred_fallthru
      _
    // Predicated region
    $region22: #{tpu_custom_call.1} parent=1 // pred_check
      _
    $region23: #{tpu_custom_call.1} parent=1 // pred_check_branch
      %45 = sbr.rel (0) target = $region25
    $region24: #{tpu_custom_call.1} parent=1 // pred_region
      _
    $region25: #{tpu_custom_call.1} parent=1 // pred_fallthru
      _
    // Predicated region
    $region26: #{tpu_custom_call.1} parent=1 // pred_check
      _
    $region27: #{tpu_custom_call.1} parent=1 // pred_check_branch
      %47 = sbr.rel (0) target = $region29
    $region28: #{tpu_custom_call.1} parent=1 // pred_region
      %48 = dma.done [#allocation3], 4096
    $region29: #{tpu_custom_call.1} parent=1 // pred_fallthru
      _
    // Predicated region
    $region30: #{tpu_custom_call.1} parent=1 // pred_check
      _
    $region31: #{tpu_custom_call.1} parent=1 // pred_check_branch
      %50 = sbr.rel (0) target = $region33
    $region32: #{tpu_custom_call.1} parent=1 // pred_region
      %51 = dma.done [#allocation6], 2048
    $region33: #{tpu_custom_call.1} parent=1 // pred_fallthru
      _
    %v52 = vld [vmem:[%s0] sm:$0xff]
    %v53 = vld [vmem:[%s0 + $0x8] sm:$0xff]
    %v54 = vld [vmem:[%s1] sm:$0x1]
    %56 = vset.pattern.permute.xlu0 0
    %57 = vperm.xlu0 %56, %v52
    %v58 = vpop.permute.xlu0 %57
    %61 = vset.pattern.permute.xlu0 0
    %62 = vperm.xlu0 %61, %v53
    %v63 = vpop.permute.xlu0 %62
    %v66 = vlaneseq
    %v67 = vshrl.u32 %v66, 7
    %v68 = vsub.s32 0, %v67
    %v69 = vrot.slane %v54, %v68
    %v71 = vmul.f32 %v58, %v69
    %v72 = vmul.f32 %v63, %v69
    %v73 = vand.u32 2147483647, %v71
    %vm74 = vcmp.le.f32.partialorder %v73, 0.7853982
    %vm75 = vcmp.lt.s32.totalorder %v71, 0
    %v76 = vand.u32 %v71, 2139095040
    %v77 = vshrl.u32 %v76, 23
    %v78 = vsub.s32 %v77, 127
    %v79 = vand.u32 2147483647, %v71
    %v80 = vand.u32 %v79, 8388607
    %v81 = vor.u32 %v80, 8388608
    %v82 = vsub.s32 0, %v81
    %v83 = vadd.s32 %v78, 1
    %vm84 = vcmp.gt.s32.totalorder %v83, 0
    %v85 = vsel %vm84, %v83, 0
    %v86 = vshrl.u32 %v85, 5
    %v87 = vand.u32 %v85, 31
    %v88 = vsub.s32 32, %v87
    %v89 = vshrl.u32 683565275, %v88
    %v90 = vshll.u32 683565275, %v87
    %v91 = vshrl.u32 2475754826, %v88
    %v92 = vor.u32 %v90, %v91
    %v93 = vshll.u32 2475754826, %v87
    %v94 = vshrl.u32 2131351028, %v88
    %v95 = vor.u32 %v93, %v94
    %v96 = vshll.u32 2131351028, %v87
    %v97 = vshrl.u32 2102212464, %v88
    %v98 = vor.u32 %v96, %v97
    %v99 = vshll.u32 2102212464, %v87
    %v100 = vshrl.u32 920167782, %v88
    %v101 = vor.u32 %v99, %v100
    %v102 = vshll.u32 920167782, %v87
    %v103 = vshrl.u32 1326507024, %v88
    %v104 = vor.u32 %v102, %v103
    %vm105 = vcmp.lt.s32.totalorder %v86, 1
    %vm106 = vcmp.lt.s32.totalorder %v86, 2
    %vm107 = vcmp.lt.s32.totalorder %v86, 3
    %vm108 = vcmp.lt.s32.totalorder %v86, 4
    %v109 = vsel %vm105, %v89, %v92
    %v110 = vsel %vm108, %v98, 2102212464
    %v111 = vsel %vm107, %v95, %v110
    %v112 = vsel %vm106, %v109, %v111
    %v113 = vsel %vm105, %v92, %v95
    %v114 = vsel %vm108, %v101, 920167782
    %v115 = vsel %vm107, %v98, %v114
    %v116 = vsel %vm106, %v113, %v115
    %v117 = vsel %vm105, %v95, %v98
    %v118 = vsel %vm108, %v104, 1326507024
    %v119 = vsel %vm107, %v101, %v118
    %v120 = vsel %vm106, %v117, %v119
    %v121 = vshll.u32 %v81, 8
    %v122 = vmul.u32.u64.compose %v121, %v120
    %v123 = vextract.low.u32 %v122
    %v124 = vextract.high.u32 %v122
    %v125 = vmul.u32.u64.compose %v121, %v116
    %v126 = vextract.low.u32 %v125
    %v127 = vextract.high.u32 %v125
    %v128 = vmul.u32 %v121, %v112
    %v129 = vadd.s32 %v124, %v126
    %vm130 = vc.u32 %v124, %v126
    %v131 = vadd.s32 %v127, 1
    %v132 = vsel %vm130, %v131, %v127
    %v133 = vadd.s32 %v128, %v132
    %v134 = vadd.s32 %v133, 536870912
    %v135 = vshrl.u32 %v134, 30
    %v136 = vshll.u32 %v135, 30
    %v137 = vsub.s32 %v133, %v136
    %vm138 = vcmp.lt.s32.totalorder %v137, 0
    %v139 = vsub.s32 0, %v137
    %v140 = vsel %vm138, %v139, %v137
    %v141 = vclz %v140
    %v142 = vsub.s32 %v141, 2
    %vm143 = vcmp.gt.s32.totalorder 0, %v142
    %v144 = vsel %vm143, 0, %v142
    %v145 = vsub.s32 32, %v144
    %v146 = vshll.u32 %v137, %v144
    %v147 = vshrl.u32 %v129, %v145
    %v148 = vor.u32 %v146, %v147
    %v149 = vsub.s32 4294967266, %v144
    %v150 = vadd.s32 %v149, 127
    %v151 = vshll.u32 %v150, 23
    %v152 = vor.u32 4788187, %v151
    %v153 = vand.u32 2147483647, %v152
    %v155 = vcvt.s32.f32 %v148
    %v156 = vmul.f32 %v155, %v153
    %v157 = vxor.u32 %v156, 2147483648
    %v158 = vsel %vm75, %v157, %v156
    %v159 = vsub.s32 4, %v135
    %v160 = vsel %vm75, %v159, %v135
    %v161 = vsel %vm74, %v71, %v158
    %v162 = vsel %vm74, 0, %v160
    %v163 = vcosq.f32.pop %v161
    %v164 = vsinq.f32.pop %v161
    %vm165 = vweird.f32 %v71
    %v166 = vand.u32 %v162, 3
    %vm167 = vcmp.lt.s32.totalorder %v166, 2
    %vm168 = vcmp.eq.s32.totalorder %v166, 0
    %v169 = vxor.u32 %v164, 2147483648
    %v170 = vsel %vm168, %v163, %v169
    %vm171 = vcmp.eq.s32.totalorder %v166, 2
    %v172 = vxor.u32 %v163, 2147483648
    %v173 = vsel %vm171, %v172, %v164
    %v174 = vsel %vm167, %v170, %v173
    %v175 = vsel %vm165, nan, %v174
    %v176 = vand.u32 2147483647, %v72
    %vm177 = vcmp.le.f32.partialorder %v176, 0.7853982
    %vm178 = vcmp.lt.s32.totalorder %v72, 0
    %v179 = vand.u32 %v72, 2139095040
    %v180 = vshrl.u32 %v179, 23
    %v181 = vsub.s32 %v180, 127
    %v182 = vand.u32 2147483647, %v72
    %v183 = vand.u32 %v182, 8388607
    %v184 = vor.u32 %v183, 8388608
    %v185 = vsub.s32 0, %v184
    %v186 = vadd.s32 %v181, 1
    %vm187 = vcmp.gt.s32.totalorder %v186, 0
    %v188 = vsel %vm187, %v186, 0
    %v189 = vshrl.u32 %v188, 5
    %v190 = vand.u32 %v188, 31
    %v191 = vsub.s32 32, %v190
    %v192 = vshrl.u32 683565275, %v191
    %v193 = vshll.u32 683565275, %v190
    %v194 = vshrl.u32 2475754826, %v191
    %v195 = vor.u32 %v193, %v194
    %v196 = vshll.u32 2475754826, %v190
    %v197 = vshrl.u32 2131351028, %v191
    %v198 = vor.u32 %v196, %v197
    %v199 = vshll.u32 2131351028, %v190
    %v200 = vshrl.u32 2102212464, %v191
    %v201 = vor.u32 %v199, %v200
    %v202 = vshll.u32 2102212464, %v190
    %v203 = vshrl.u32 920167782, %v191
    %v204 = vor.u32 %v202, %v203
    %v205 = vshll.u32 920167782, %v190
    %v206 = vshrl.u32 1326507024, %v191
    %v207 = vor.u32 %v205, %v206
    %vm208 = vcmp.lt.s32.totalorder %v189, 1
    %vm209 = vcmp.lt.s32.totalorder %v189, 2
    %vm210 = vcmp.lt.s32.totalorder %v189, 3
    %vm211 = vcmp.lt.s32.totalorder %v189, 4
    %v212 = vsel %vm208, %v192, %v195
    %v213 = vsel %vm211, %v201, 2102212464
    %v214 = vsel %vm210, %v198, %v213
    %v215 = vsel %vm209, %v212, %v214
    %v216 = vsel %vm208, %v195, %v198
    %v217 = vsel %vm211, %v204, 920167782
    %v218 = vsel %vm210, %v201, %v217
    %v219 = vsel %vm209, %v216, %v218
    %v220 = vsel %vm208, %v198, %v201
    %v221 = vsel %vm211, %v207, 1326507024
    %v222 = vsel %vm210, %v204, %v221
    %v223 = vsel %vm209, %v220, %v222
    %v224 = vshll.u32 %v184, 8
    %v225 = vmul.u32.u64.compose %v224, %v223
    %v226 = vextract.low.u32 %v225
    %v227 = vextract.high.u32 %v225
    %v228 = vmul.u32.u64.compose %v224, %v219
    %v229 = vextract.low.u32 %v228
    %v230 = vextract.high.u32 %v228
    %v231 = vmul.u32 %v224, %v215
    %v232 = vadd.s32 %v227, %v229
    %vm233 = vc.u32 %v227, %v229
    %v234 = vadd.s32 %v230, 1
    %v235 = vsel %vm233, %v234, %v230
    %v236 = vadd.s32 %v231, %v235
    %v237 = vadd.s32 %v236, 536870912
    %v238 = vshrl.u32 %v237, 30
    %v239 = vshll.u32 %v238, 30
    %v240 = vsub.s32 %v236, %v239
    %vm241 = vcmp.lt.s32.totalorder %v240, 0
    %v242 = vsub.s32 0, %v240
    %v243 = vsel %vm241, %v242, %v240
    %v244 = vclz %v243
    %v245 = vsub.s32 %v244, 2
    %vm246 = vcmp.gt.s32.totalorder 0, %v245
    %v247 = vsel %vm246, 0, %v245
    %v248 = vsub.s32 32, %v247
    %v249 = vshll.u32 %v240, %v247
    %v250 = vshrl.u32 %v232, %v248
    %v251 = vor.u32 %v249, %v250
    %v252 = vsub.s32 4294967266, %v247
    %v253 = vadd.s32 %v252, 127
    %v254 = vshll.u32 %v253, 23
    %v255 = vor.u32 4788187, %v254
    %v256 = vand.u32 2147483647, %v255
    %v258 = vcvt.s32.f32 %v251
    %v259 = vmul.f32 %v258, %v256
    %v260 = vxor.u32 %v259, 2147483648
    %v261 = vsel %vm178, %v260, %v259
    %v262 = vsub.s32 4, %v238
    %v263 = vsel %vm178, %v262, %v238
    %v264 = vsel %vm177, %v72, %v261
    %v265 = vsel %vm177, 0, %v263
    %v266 = vcosq.f32.pop %v264
    %v267 = vsinq.f32.pop %v264
    %vm268 = vweird.f32 %v72
    %v269 = vand.u32 %v265, 3
    %vm270 = vcmp.lt.s32.totalorder %v269, 2
    %vm271 = vcmp.eq.s32.totalorder %v269, 0
    %v272 = vxor.u32 %v267, 2147483648
    %v273 = vsel %vm271, %v266, %v272
    %vm274 = vcmp.eq.s32.totalorder %v269, 2
    %v275 = vxor.u32 %v266, 2147483648
    %v276 = vsel %vm274, %v275, %v267
    %v277 = vsel %vm270, %v273, %v276
    %v278 = vsel %vm268, nan, %v277
    %v279 = vand.u32 2147483647, %v71
    %vm280 = vcmp.le.f32.partialorder %v279, 0.7853982
    %vm281 = vcmp.lt.s32.totalorder %v71, 0
    %v282 = vand.u32 %v71, 2139095040
    %v283 = vshrl.u32 %v282, 23
    %v284 = vsub.s32 %v283, 127
    %v285 = vand.u32 2147483647, %v71
    %v286 = vand.u32 %v285, 8388607
    %v287 = vor.u32 %v286, 8388608
    %v288 = vsub.s32 0, %v287
    %v289 = vadd.s32 %v284, 1
    %vm290 = vcmp.gt.s32.totalorder %v289, 0
    %v291 = vsel %vm290, %v289, 0
    %v292 = vshrl.u32 %v291, 5
    %v293 = vand.u32 %v291, 31
    %v294 = vsub.s32 32, %v293
    %v295 = vshrl.u32 683565275, %v294
    %v296 = vshll.u32 683565275, %v293
    %v297 = vshrl.u32 2475754826, %v294
    %v298 = vor.u32 %v296, %v297
    %v299 = vshll.u32 2475754826, %v293
    %v300 = vshrl.u32 2131351028, %v294
    %v301 = vor.u32 %v299, %v300
    %v302 = vshll.u32 2131351028, %v293
    %v303 = vshrl.u32 2102212464, %v294
    %v304 = vor.u32 %v302, %v303
    %v305 = vshll.u32 2102212464, %v293
    %v306 = vshrl.u32 920167782, %v294
    %v307 = vor.u32 %v305, %v306
    %v308 = vshll.u32 920167782, %v293
    %v309 = vshrl.u32 1326507024, %v294
    %v310 = vor.u32 %v308, %v309
    %vm311 = vcmp.lt.s32.totalorder %v292, 1
    %vm312 = vcmp.lt.s32.totalorder %v292, 2
    %vm313 = vcmp.lt.s32.totalorder %v292, 3
    %vm314 = vcmp.lt.s32.totalorder %v292, 4
    %v315 = vsel %vm311, %v295, %v298
    %v316 = vsel %vm314, %v304, 2102212464
    %v317 = vsel %vm313, %v301, %v316
    %v318 = vsel %vm312, %v315, %v317
    %v319 = vsel %vm311, %v298, %v301
    %v320 = vsel %vm314, %v307, 920167782
    %v321 = vsel %vm313, %v304, %v320
    %v322 = vsel %vm312, %v319, %v321
    %v323 = vsel %vm311, %v301, %v304
    %v324 = vsel %vm314, %v310, 1326507024
    %v325 = vsel %vm313, %v307, %v324
    %v326 = vsel %vm312, %v323, %v325
    %v327 = vshll.u32 %v287, 8
    %v328 = vmul.u32.u64.compose %v327, %v326
    %v329 = vextract.low.u32 %v328
    %v330 = vextract.high.u32 %v328
    %v331 = vmul.u32.u64.compose %v327, %v322
    %v332 = vextract.low.u32 %v331
    %v333 = vextract.high.u32 %v331
    %v334 = vmul.u32 %v327, %v318
    %v335 = vadd.s32 %v330, %v332
    %vm336 = vc.u32 %v330, %v332
    %v337 = vadd.s32 %v333, 1
    %v338 = vsel %vm336, %v337, %v333
    %v339 = vadd.s32 %v334, %v338
    %v340 = vadd.s32 %v339, 536870912
    %v341 = vshrl.u32 %v340, 30
    %v342 = vshll.u32 %v341, 30
    %v343 = vsub.s32 %v339, %v342
    %vm344 = vcmp.lt.s32.totalorder %v343, 0
    %v345 = vsub.s32 0, %v343
    %v346 = vsel %vm344, %v345, %v343
    %v347 = vclz %v346
    %v348 = vsub.s32 %v347, 2
    %vm349 = vcmp.gt.s32.totalorder 0, %v348
    %v350 = vsel %vm349, 0, %v348
    %v351 = vsub.s32 32, %v350
    %v352 = vshll.u32 %v343, %v350
    %v353 = vshrl.u32 %v335, %v351
    %v354 = vor.u32 %v352, %v353
    %v355 = vsub.s32 4294967266, %v350
    %v356 = vadd.s32 %v355, 127
    %v357 = vshll.u32 %v356, 23
    %v358 = vor.u32 4788187, %v357
    %v359 = vand.u32 2147483647, %v358
    %v361 = vcvt.s32.f32 %v354
    %v362 = vmul.f32 %v361, %v359
    %v363 = vxor.u32 %v362, 2147483648
    %v364 = vsel %vm281, %v363, %v362
    %v365 = vsub.s32 4, %v341
    %v366 = vsel %vm281, %v365, %v341
    %v367 = vsel %vm280, %v71, %v364
    %v368 = vsel %vm280, 0, %v366
    %v369 = vcosq.f32.pop %v367
    %v370 = vsinq.f32.pop %v367
    %vm371 = vweird.f32 %v71
    %v372 = vadd.s32 %v368, 3
    %v373 = vand.u32 %v372, 3
    %vm374 = vcmp.lt.s32.totalorder %v373, 2
    %vm375 = vcmp.eq.s32.totalorder %v373, 0
    %v376 = vxor.u32 %v370, 2147483648
    %v377 = vsel %vm375, %v369, %v376
    %vm378 = vcmp.eq.s32.totalorder %v373, 2
    %v379 = vxor.u32 %v369, 2147483648
    %v380 = vsel %vm378, %v379, %v370
    %v381 = vsel %vm374, %v377, %v380
    %v382 = vsel %vm371, nan, %v381
    %v383 = vand.u32 2147483647, %v72
    %vm384 = vcmp.le.f32.partialorder %v383, 0.7853982
    %vm385 = vcmp.lt.s32.totalorder %v72, 0
    %v386 = vand.u32 %v72, 2139095040
    %v387 = vshrl.u32 %v386, 23
    %v388 = vsub.s32 %v387, 127
    %v389 = vand.u32 2147483647, %v72
    %v390 = vand.u32 %v389, 8388607
    %v391 = vor.u32 %v390, 8388608
    %v392 = vsub.s32 0, %v391
    %v393 = vadd.s32 %v388, 1
    %vm394 = vcmp.gt.s32.totalorder %v393, 0
    %v395 = vsel %vm394, %v393, 0
    %v396 = vshrl.u32 %v395, 5
    %v397 = vand.u32 %v395, 31
    %v398 = vsub.s32 32, %v397
    %v399 = vshrl.u32 683565275, %v398
    %v400 = vshll.u32 683565275, %v397
    %v401 = vshrl.u32 2475754826, %v398
    %v402 = vor.u32 %v400, %v401
    %v403 = vshll.u32 2475754826, %v397
    %v404 = vshrl.u32 2131351028, %v398
    %v405 = vor.u32 %v403, %v404
    %v406 = vshll.u32 2131351028, %v397
    %v407 = vshrl.u32 2102212464, %v398
    %v408 = vor.u32 %v406, %v407
    %v409 = vshll.u32 2102212464, %v397
    %v410 = vshrl.u32 920167782, %v398
    %v411 = vor.u32 %v409, %v410
    %v412 = vshll.u32 920167782, %v397
    %v413 = vshrl.u32 1326507024, %v398
    %v414 = vor.u32 %v412, %v413
    %vm415 = vcmp.lt.s32.totalorder %v396, 1
    %vm416 = vcmp.lt.s32.totalorder %v396, 2
    %vm417 = vcmp.lt.s32.totalorder %v396, 3
    %vm418 = vcmp.lt.s32.totalorder %v396, 4
    %v419 = vsel %vm415, %v399, %v402
    %v420 = vsel %vm418, %v408, 2102212464
    %v421 = vsel %vm417, %v405, %v420
    %v422 = vsel %vm416, %v419, %v421
    %v423 = vsel %vm415, %v402, %v405
    %v424 = vsel %vm418, %v411, 920167782
    %v425 = vsel %vm417, %v408, %v424
    %v426 = vsel %vm416, %v423, %v425
    %v427 = vsel %vm415, %v405, %v408
    %v428 = vsel %vm418, %v414, 1326507024
    %v429 = vsel %vm417, %v411, %v428
    %v430 = vsel %vm416, %v427, %v429
    %v431 = vshll.u32 %v391, 8
    %v432 = vmul.u32.u64.compose %v431, %v430
    %v433 = vextract.low.u32 %v432
    %v434 = vextract.high.u32 %v432
    %v435 = vmul.u32.u64.compose %v431, %v426
    %v436 = vextract.low.u32 %v435
    %v437 = vextract.high.u32 %v435
    %v438 = vmul.u32 %v431, %v422
    %v439 = vadd.s32 %v434, %v436
    %vm440 = vc.u32 %v434, %v436
    %v441 = vadd.s32 %v437, 1
    %v442 = vsel %vm440, %v441, %v437
    %v443 = vadd.s32 %v438, %v442
    %v444 = vadd.s32 %v443, 536870912
    %v445 = vshrl.u32 %v444, 30
    %v446 = vshll.u32 %v445, 30
    %v447 = vsub.s32 %v443, %v446
    %vm448 = vcmp.lt.s32.totalorder %v447, 0
    %v449 = vsub.s32 0, %v447
    %v450 = vsel %vm448, %v449, %v447
    %v451 = vclz %v450
    %v452 = vsub.s32 %v451, 2
    %vm453 = vcmp.gt.s32.totalorder 0, %v452
    %v454 = vsel %vm453, 0, %v452
    %v455 = vsub.s32 32, %v454
    %v456 = vshll.u32 %v447, %v454
    %v457 = vshrl.u32 %v439, %v455
    %v458 = vor.u32 %v456, %v457
    %v459 = vsub.s32 4294967266, %v454
    %v460 = vadd.s32 %v459, 127
    %v461 = vshll.u32 %v460, 23
    %v462 = vor.u32 4788187, %v461
    %v463 = vand.u32 2147483647, %v462
    %v465 = vcvt.s32.f32 %v458
    %v466 = vmul.f32 %v465, %v463
    %v467 = vxor.u32 %v466, 2147483648
    %v468 = vsel %vm385, %v467, %v466
    %v469 = vsub.s32 4, %v445
    %v470 = vsel %vm385, %v469, %v445
    %v471 = vsel %vm384, %v72, %v468
    %v472 = vsel %vm384, 0, %v470
    %v473 = vcosq.f32.pop %v471
    %v474 = vsinq.f32.pop %v471
    %vm475 = vweird.f32 %v72
    %v476 = vadd.s32 %v472, 3
    %v477 = vand.u32 %v476, 3
    %vm478 = vcmp.lt.s32.totalorder %v477, 2
    %vm479 = vcmp.eq.s32.totalorder %v477, 0
    %v480 = vxor.u32 %v474, 2147483648
    %v481 = vsel %vm479, %v473, %v480
    %vm482 = vcmp.eq.s32.totalorder %v477, 2
    %v483 = vxor.u32 %v473, 2147483648
    %v484 = vsel %vm482, %v483, %v474
    %v485 = vsel %vm478, %v481, %v484
    %v486 = vsel %vm475, nan, %v485
    %v487 = vld [vmem:[#allocation2] sm:$0xff]
    %v488 = vld [vmem:[#allocation2 + $0x8] sm:$0xff]
    %v489 = vld [vmem:[#allocation2 + $0x10] sm:$0xff]
    %v490 = vld [vmem:[#allocation2 + $0x18] sm:$0xff]
    %v491 = vld [vmem:[#allocation2 + $0x20] sm:$0xff]
    %v492 = vld [vmem:[#allocation2 + $0x28] sm:$0xff]
    %v493 = vld [vmem:[#allocation2 + $0x30] sm:$0xff]
    %v494 = vld [vmem:[#allocation2 + $0x38] sm:$0xff]
    %v495 = vld [vmem:[#allocation2 + $0x40] sm:$0xff]
    %v496 = vld [vmem:[#allocation2 + $0x48] sm:$0xff]
    %v497 = vld [vmem:[#allocation2 + $0x50] sm:$0xff]
    %v498 = vld [vmem:[#allocation2 + $0x58] sm:$0xff]
    %v499 = vld [vmem:[#allocation2 + $0x60] sm:$0xff]
    %v500 = vld [vmem:[#allocation2 + $0x68] sm:$0xff]
    %v501 = vld [vmem:[#allocation2 + $0x70] sm:$0xff]
    %v502 = vld [vmem:[#allocation2 + $0x78] sm:$0xff]
    %v503 = vld [vmem:[#allocation2 + $0x80] sm:$0xff]
    %v504 = vld [vmem:[#allocation2 + $0x88] sm:$0xff]
    %v505 = vld [vmem:[#allocation2 + $0x90] sm:$0xff]
    %v506 = vld [vmem:[#allocation2 + $0x98] sm:$0xff]
    %v507 = vld [vmem:[#allocation2 + $0xa0] sm:$0xff]
    %v508 = vld [vmem:[#allocation2 + $0xa8] sm:$0xff]
    %v509 = vld [vmem:[#allocation2 + $0xb0] sm:$0xff]
    %v510 = vld [vmem:[#allocation2 + $0xb8] sm:$0xff]
    %v511 = vld [vmem:[#allocation2 + $0xc0] sm:$0xff]
    %v512 = vld [vmem:[#allocation2 + $0xc8] sm:$0xff]
    %v513 = vld [vmem:[#allocation2 + $0xd0] sm:$0xff]
    %v514 = vld [vmem:[#allocation2 + $0xd8] sm:$0xff]
    %v515 = vld [vmem:[#allocation2 + $0xe0] sm:$0xff]
    %v516 = vld [vmem:[#allocation2 + $0xe8] sm:$0xff]
    %v517 = vld [vmem:[#allocation2 + $0xf0] sm:$0xff]
    %v518 = vld [vmem:[#allocation2 + $0xf8] sm:$0xff]
    %v519 = vld [vmem:[%s3] sm:$0x1]
    %v521 = vlaneseq
    %v522 = vshrl.u32 %v521, 7
    %v523 = vsub.s32 0, %v522
    %v524 = vrot.slane %v519, %v523
    %526 = vmatprep.subr.mxu0 0.0
    %527 = vmatpush1.msra.mxu0 %v502
    %528 = vmatprep.subr.mxu0 0.0
    %529 = vmatpush1.msra.mxu0 %v501
    %530 = vmatprep.subr.mxu0 0.0
    %531 = vmatpush1.msra.mxu0 %v500
    %532 = vmatprep.subr.mxu0 0.0
    %533 = vmatpush1.msra.mxu0 %v499
    %534 = vmatprep.subr.mxu0 0.0
    %535 = vmatpush1.msra.mxu0 %v498
    %536 = vmatprep.subr.mxu0 0.0
    %537 = vmatpush1.msra.mxu0 %v497
    %538 = vmatprep.subr.mxu0 0.0
    %539 = vmatpush1.msra.mxu0 %v496
    %540 = vmatprep.subr.mxu0 0.0
    %541 = vmatpush1.msra.mxu0 %v495
    %542 = vmatprep.subr.mxu0 0.0
    %543 = vmatpush1.msra.mxu0 %v494
    %544 = vmatprep.subr.mxu0 0.0
    %545 = vmatpush1.msra.mxu0 %v493
    %546 = vmatprep.subr.mxu0 0.0
    %547 = vmatpush1.msra.mxu0 %v492
    %548 = vmatprep.subr.mxu0 0.0
    %549 = vmatpush1.msra.mxu0 %v491
    %550 = vmatprep.subr.mxu0 0.0
    %551 = vmatpush1.msra.mxu0 %v490
    %552 = vmatprep.subr.mxu0 0.0
    %553 = vmatpush1.msra.mxu0 %v489
    %554 = vmatprep.subr.mxu0 0.0
    %555 = vmatpush1.msra.mxu0 %v488
    %556 = vmatprep.subr.mxu0 0.0
    %557 = vmatpush1.msra.mxu0 %v487
    %558 = vmatprep.subr.mxu0 0.0
    %559 = vmatpush2.msra.mxu0 %v518
    %560 = vmatprep.subr.mxu0 0.0
    %561 = vmatpush2.msra.mxu0 %v517
    %562 = vmatprep.subr.mxu0 0.0
    %563 = vmatpush2.msra.mxu0 %v516
    %564 = vmatprep.subr.mxu0 0.0
    %565 = vmatpush2.msra.mxu0 %v515
    %566 = vmatprep.subr.mxu0 0.0
    %567 = vmatpush2.msra.mxu0 %v514
    %568 = vmatprep.subr.mxu0 0.0
    %569 = vmatpush2.msra.mxu0 %v513
    %570 = vmatprep.subr.mxu0 0.0
    %571 = vmatpush2.msra.mxu0 %v512
    %572 = vmatprep.subr.mxu0 0.0
    %573 = vmatpush2.msra.mxu0 %v511
    %574 = vmatprep.subr.mxu0 0.0
    %575 = vmatpush2.msra.mxu0 %v510
    %576 = vmatprep.subr.mxu0 0.0
    %577 = vmatpush2.msra.mxu0 %v509
    %578 = vmatprep.subr.mxu0 0.0
    %579 = vmatpush2.msra.mxu0 %v508
    %580 = vmatprep.subr.mxu0 0.0
    %581 = vmatpush2.msra.mxu0 %v507
    %582 = vmatprep.subr.mxu0 0.0
    %583 = vmatpush2.msra.mxu0 %v506
    %584 = vmatprep.subr.mxu0 0.0
    %585 = vmatpush2.msra.mxu0 %v505
    %586 = vmatprep.subr.mxu0 0.0
    %587 = vmatpush2.msra.mxu0 %v504
    %588 = vmatprep.subr.mxu0 0.0
    %589 = vmatpush2.msra.mxu0 %v503
    %590 = vmatprep.mubr.f32.mxu0 %v382
    %591 = vmatmul.mubr.f32.gmra.mxu0 %v175
    %v592 = vpop.f32.mrf.mxu0
    %v593 = vadd.f32 %v524, %v592
    %v594 = vpop.f32.mrf.mxu0
    %595 = vmatprep.mubr.f32.mxu0 %v486
    %596 = vmatmul.mubr.f32.gmra.mxu0 %v278
    %v597 = vpop.f32.mrf.mxu0
    %v598 = vadd.f32 %v524, %v597
    %v599 = vpop.f32.mrf.mxu0
    %600 = vdwg.mxu0
    %v601 = vxor.u32 %v593, 2147483648
    %v602 = vxor.u32 %v598, 2147483648
    %v603 = vmul.f32 %v601, 1.442695
    %v604 = vpow.pop %v603
    %v605 = vmul.f32 %v602, 1.442695
    %v606 = vpow.pop %v605
    %v607 = vadd.f32 %v604, 1.0
    %v608 = vadd.f32 %v606, 1.0
    %v609 = vrcp.pop %v607
    %v610 = vmul.f32 1.0, %v609
    %v611 = vrcp.pop %v608
    %v612 = vmul.f32 1.0, %v611
    %v613 = vmul.f32 %v593, %v610
    %v614 = vmul.f32 %v598, %v612
    %v615 = vld [vmem:[#allocation5] sm:$0xff]
    %v616 = vld [vmem:[#allocation5 + $0x8] sm:$0xff]
    %v617 = vld [vmem:[#allocation5 + $0x10] sm:$0xff]
    %v618 = vld [vmem:[#allocation5 + $0x18] sm:$0xff]
    %v619 = vld [vmem:[#allocation5 + $0x20] sm:$0xff]
    %v620 = vld [vmem:[#allocation5 + $0x28] sm:$0xff]
    %v621 = vld [vmem:[#allocation5 + $0x30] sm:$0xff]
    %v622 = vld [vmem:[#allocation5 + $0x38] sm:$0xff]
    %v623 = vld [vmem:[#allocation5 + $0x40] sm:$0xff]
    %v624 = vld [vmem:[#allocation5 + $0x48] sm:$0xff]
    %v625 = vld [vmem:[#allocation5 + $0x50] sm:$0xff]
    %v626 = vld [vmem:[#allocation5 + $0x58] sm:$0xff]
    %v627 = vld [vmem:[#allocation5 + $0x60] sm:$0xff]
    %v628 = vld [vmem:[#allocation5 + $0x68] sm:$0xff]
    %v629 = vld [vmem:[#allocation5 + $0x70] sm:$0xff]
    %v630 = vld [vmem:[#allocation5 + $0x78] sm:$0xff]
    %v631 = vld [vmem:[%s5] sm:$0x1]
    %v633 = vlaneseq
    %v634 = vshrl.u32 %v633, 7
    %v635 = vsub.s32 0, %v634
    %v636 = vrot.slane %v631, %v635
    %638 = vmatprep.subr.mxu0 0.0
    %639 = vmatpush1.msra.mxu0 %v630
    %640 = vmatprep.subr.mxu0 0.0
    %641 = vmatpush1.msra.mxu0 %v629
    %642 = vmatprep.subr.mxu0 0.0
    %643 = vmatpush1.msra.mxu0 %v628
    %644 = vmatprep.subr.mxu0 0.0
    %645 = vmatpush1.msra.mxu0 %v627
    %646 = vmatprep.subr.mxu0 0.0
    %647 = vmatpush1.msra.mxu0 %v626
    %648 = vmatprep.subr.mxu0 0.0
    %649 = vmatpush1.msra.mxu0 %v625
    %650 = vmatprep.subr.mxu0 0.0
    %651 = vmatpush1.msra.mxu0 %v624
    %652 = vmatprep.subr.mxu0 0.0
    %653 = vmatpush1.msra.mxu0 %v623
    %654 = vmatprep.subr.mxu0 0.0
    %655 = vmatpush1.msra.mxu0 %v622
    %656 = vmatprep.subr.mxu0 0.0
    %657 = vmatpush1.msra.mxu0 %v621
    %658 = vmatprep.subr.mxu0 0.0
    %659 = vmatpush1.msra.mxu0 %v620
    %660 = vmatprep.subr.mxu0 0.0
    %661 = vmatpush1.msra.mxu0 %v619
    %662 = vmatprep.subr.mxu0 0.0
    %663 = vmatpush1.msra.mxu0 %v618
    %664 = vmatprep.subr.mxu0 0.0
    %665 = vmatpush1.msra.mxu0 %v617
    %666 = vmatprep.subr.mxu0 0.0
    %667 = vmatpush1.msra.mxu0 %v616
    %668 = vmatprep.subr.mxu0 0.0
    %669 = vmatpush1.msra.mxu0 %v615
    %670 = vmatprep.subr.mxu0 0.0
    %671 = vmatpush2.msra.mxu0 0.0
    %672 = vmatprep.subr.mxu0 0.0
    %673 = vmatpush2.msra.mxu0 0.0
    %674 = vmatprep.subr.mxu0 0.0
    %675 = vmatpush2.msra.mxu0 0.0
    %676 = vmatprep.subr.mxu0 0.0
    %677 = vmatpush2.msra.mxu0 0.0
    %678 = vmatprep.subr.mxu0 0.0
    %679 = vmatpush2.msra.mxu0 0.0
    %680 = vmatprep.subr.mxu0 0.0
    %681 = vmatpush2.msra.mxu0 0.0
    %682 = vmatprep.subr.mxu0 0.0
    %683 = vmatpush2.msra.mxu0 0.0
    %684 = vmatprep.subr.mxu0 0.0
    %685 = vmatpush2.msra.mxu0 0.0
    %686 = vmatprep.subr.mxu0 0.0
    %687 = vmatpush2.msra.mxu0 0.0
    %688 = vmatprep.subr.mxu0 0.0
    %689 = vmatpush2.msra.mxu0 0.0
    %690 = vmatprep.subr.mxu0 0.0
    %691 = vmatpush2.msra.mxu0 0.0
    %692 = vmatprep.subr.mxu0 0.0
    %693 = vmatpush2.msra.mxu0 0.0
    %694 = vmatprep.subr.mxu0 0.0
    %695 = vmatpush2.msra.mxu0 0.0
    %696 = vmatprep.subr.mxu0 0.0
    %697 = vmatpush2.msra.mxu0 0.0
    %698 = vmatprep.subr.mxu0 0.0
    %699 = vmatpush2.msra.mxu0 0.0
    %700 = vmatprep.subr.mxu0 0.0
    %701 = vmatpush2.msra.mxu0 0.0
    %702 = vmatprep.mubr.f32.mxu0 0.0
    %703 = vmatmul.mubr.f32.gmra.mxu0 %v613
    %v704 = vpop.f32.mrf.mxu0
    %v705 = vadd.f32 %v636, %v704
    %v706 = vpop.f32.mrf.mxu0
    %707 = vmatprep.mubr.f32.mxu0 0.0
    %708 = vmatmul.mubr.f32.gmra.mxu0 %v614
    %v709 = vpop.f32.mrf.mxu0
    %v710 = vadd.f32 %v636, %v709
    %v711 = vpop.f32.mrf.mxu0
    %712 = vdwg.mxu0
    %713 = vst [vmem:[#allocation7] sm:$0xff] %v705
    %714 = vst [vmem:[#allocation7 + $0x8] sm:$0xff] %v710
    // Predicated region
    $region34: #{tpu_custom_call.1} parent=1 // pred_check
      _
    $region35: #{tpu_custom_call.1} parent=1 // pred_check_branch
      %716 = sbr.rel (0) target = $region37
    $region36: #{tpu_custom_call.1} parent=1 // pred_region
      %s718 = ssub.s32 256, 256
      %719 = vsyncadd [#allocation4], %s718
      %s720 = sshll.u32 [#allocation7], 4
      %s721 = int_to_ptr.vmem [resolvable:$true] %s720
      %726 = dma.vmem_to_hbm [thread:$0]  %s721, 256, %s6, [#allocation4], 128, 128, 8
    $region37: #{tpu_custom_call.1} parent=1 // pred_fallthru
      _
    // Predicated region
    $region38: #{tpu_custom_call.1} parent=1 // pred_check
      _
    $region39: #{tpu_custom_call.1} parent=1 // pred_check_branch
      %728 = sbr.rel (0) target = $region41
    $region40: #{tpu_custom_call.1} parent=1 // pred_region
      %729 = dma.done [#allocation4], 256
    $region41: #{tpu_custom_call.1} parent=1 // pred_fallthru
      _
    %730 = vsyncpa [#allocation3], 1
    %731 = vsyncpa [#allocation6], 1
    %732 = vsyncpa [#allocation4], 1

</llo_original>
